<compile_context>
chip_gen: v5e
topology: v5e:2x2
jax: 0.10.0
libtpu: 0.0.40
codegen_flags: <defaults>
</compile_context>

<pallas_src>
import math
import functools
import numpy as np
import jax
import jax.numpy as jnp
from jax import lax
from jax.experimental import pallas as pl
from jax.experimental.pallas import tpu as pltpu

LANES = 128   # f32 lane width
SUB = 8       # f32 sublane height


# ----------------------------- packed-constant layout -----------------------------

def _make_layout(Ip, H, O, S, Bp):
    SBp = S * Bp
    entries = [
        ("wih1", Ip, H),
        ("whh1", H, H),
        ("wqkv", H, 3 * H),
        ("wo",   H, H),
        ("wih2", H, H),
        ("whh2", H, H),
        ("wfcB", H, LANES),
        ("pe",   Bp, H),
        ("b1",   SUB, H),
        ("bqkv", SUB, 3 * H),
        ("bo",   SUB, H),
        ("b2",   SUB, H),
        ("bfcB", SUB, LANES),
        ("mask", SBp, SBp),
    ]
    layout, off = {}, 0
    for name, r, c in entries:
        layout[name] = (off, r, c)
        off += r
    return layout, off


def prepare_params(params, pe, batch, n_letters, n_hidden, n_categories, seq_len):
    """One-time prep: transpose / fold / pad every constant and pack into a single
    (rows, 128) f32 buffer -> exactly one constant DMA per kernel call and zero
    per-call wrapper ops on the parameters."""
    I, H, O, S = n_letters, n_hidden, n_categories, seq_len
    Bp = ((max(batch, 1) + SUB - 1) // SUB) * SUB     # pad batch to a full sublane
    Ip = ((I + SUB - 1) // SUB) * SUB                 # pad input features likewise
    assert H % SUB == 0 and O + H <= LANES and 3 * H <= LANES
    layout, rows = _make_layout(Ip, H, O, S, Bp)
    buf = np.zeros((rows, LANES), np.float32)

    def put(name, arr):
        off, _, _ = layout[name]
        arr = np.asarray(arr, np.float32)
        buf[off:off + arr.shape[0], :arr.shape[1]] = arr

    put("wih1", np.asarray(params["w_ih1"], np.float32).T)        # (I, H)
    put("whh1", np.asarray(params["w_hh1"], np.float32).T)        # (H, H)
    put("wqkv", np.asarray(params["attn_in_w"], np.float32).T)    # (H, 3H), cols = q|k|v
    put("wo",   np.asarray(params["attn_out_w"], np.float32).T)   # (H, H)
    put("wih2", np.asarray(params["w_ih2"], np.float32).T)        # (H, H)
    put("whh2", np.asarray(params["w_hh2"], np.float32).T)        # (H, H)
    wfcB = np.zeros((H, LANES), np.float32)                       # fc + hT-passthrough fused
    wfcB[:, :O] = np.asarray(params["w_fc"], np.float32).T
    wfcB[:, O:O + H] = np.eye(H, dtype=np.float32)
    put("wfcB", wfcB)
    put("pe",   np.asarray(pe, np.float32)[:Bp, :H])              # pe[:, :x.size(1)] quirk
    put("b1",   (np.asarray(params["b_ih1"], np.float32)
                 + np.asarray(params["b_hh1"], np.float32))[None, :])
    put("bqkv", np.asarray(params["attn_in_b"], np.float32)[None, :])
    put("bo",   np.asarray(params["attn_out_b"], np.float32)[None, :])
    put("b2",   (np.asarray(params["b_ih2"], np.float32)
                 + np.asarray(params["b_hh2"], np.float32))[None, :])
    bfcB = np.zeros((1, LANES), np.float32)
    bfcB[0, :O] = np.asarray(params["b_fc"], np.float32)
    put("bfcB", bfcB)
    rb = np.arange(S * Bp) % Bp                                   # additive block-diag mask
    put("mask", np.where(rb[:, None] == rb[None, :], 0.0, -1e30).astype(np.float32))

    meta = dict(I=I, Ip=Ip, H=H, O=O, S=S, B=batch, Bp=Bp, layout=layout)
    return jnp.asarray(buf), meta


# ----------------------------- fused Pallas kernel -----------------------------

def _fused_forward_kernel(L, Ip, H, O, S, Bp,
                          x_ref, h0_ref, c_ref, res_ref, y1_ref):
    f32, bf16 = jnp.float32, jnp.bfloat16

    def w(name):                       # static view into the packed constant buffer
        off, r, c = L[name]
        return c_ref[off:off + r, :c]

    def w16(name):                     # bf16 MXU operands, f32 accumulation
        return w(name).astype(bf16)

    def b(name):
        off, _, c = L[name]
        return c_ref[off:off + 1, :c]

    # ---- RNN layer 1: hoisted input projection + serial tanh recurrence ----
    xw1 = jnp.dot(x_ref[...].astype(bf16), w16("wih1"),
                  preferred_element_type=f32) + b("b1")           # (S*Bp, H)
    whh1 = w16("whh1")
    pe_b = w("pe")                                                # (Bp, H)
    h = h0_ref[...]
    for t in range(S):                                            # static unroll
        h = jnp.tanh(xw1[t * Bp:(t + 1) * Bp, :]
                     + jnp.dot(h.astype(bf16), whh1, preferred_element_type=f32))
        y1_ref[t * Bp:(t + 1) * Bp, :] = h + pe_b                 # aligned 8-row stores
    h1 = h                                                        # seeds RNN layer 2

    # ---- single-head self-attention (fused QKV, block-diag batch mask) -----
    y1 = y1_ref[...]
    qkv = jnp.dot(y1.astype(bf16), w16("wqkv"),
                  preferred_element_type=f32) + b("bqkv")         # (S*Bp, 3H)
    q = (qkv[:, 0:H] * (1.0 / math.sqrt(H))).astype(bf16)         # torch MHA scaling
    k = qkv[:, H:2 * H].astype(bf16)
    v = qkv[:, 2 * H:3 * H].astype(bf16)
    s = lax.dot_general(q, k, (((1,), (1,)), ((), ())),
                        preferred_element_type=f32) + w("mask")   # (S*Bp, S*Bp)
    s = s - jnp.max(s, axis=-1, keepdims=True)
    p = jnp.exp(s)
    p = p * pl.reciprocal(jnp.sum(p, axis=-1, keepdims=True), approx=True)
    ctx = jnp.dot(p.astype(bf16), v, preferred_element_type=f32)  # (S*Bp, H)
    attn = jnp.dot(ctx.astype(bf16), w16("wo"),
                   preferred_element_type=f32) + b("bo")
    y = y1 + attn                                                 # residual, f32

    # ---- RNN layer 2 (only the final hidden state is ever needed) ----------
    xw2 = jnp.dot(y.astype(bf16), w16("wih2"),
                  preferred_element_type=f32) + b("b2")           # (S*Bp, H)
    whh2 = w16("whh2")
    h = h1
    for t in range(S):                                            # static unroll
        h = jnp.tanh(xw2[t * Bp:(t + 1) * Bp, :]
                     + jnp.dot(h.astype(bf16), whh2, preferred_element_type=f32))

    # ---- fused head: lanes [0,O)=exp(fc(h)), lanes [O,O+H)=hT, rest 0 ------
    z = jnp.dot(h.astype(bf16), w16("wfcB"),
                preferred_element_type=f32) + b("bfcB")           # (Bp, 128)
    lane = lax.broadcasted_iota(jnp.int32, (Bp, LANES), 1)
    res_ref[...] = jnp.where(lane < O, jnp.exp(z), z)             # one lane-dense store


# ----------------------------- wrapper -----------------------------

def rnn_hlr_forward(x, hx, packed, meta):
    """x: (S, B, n_letters), hx: (1, B, H). Returns (exp(fc(y2[-1])), h2[None])."""
    S, B, I = x.shape
    H, O, Bp, Ip = meta["H"], meta["O"], meta["Bp"], meta["Ip"]
    # Pad batch to one full f32 sublane and features to a sublane multiple;
    # time-major rows: row = t*Bp + b (matches the packed block-diag mask).
    x_pad = (jnp.zeros((S, Bp, Ip), jnp.float32)
             .at[:, :B, :I].set(x.astype(jnp.float32))
             .reshape(S * Bp, Ip))
    h0_pad = jnp.zeros((Bp, H), jnp.float32).at[:B, :].set(hx[0].astype(jnp.float32))

    kernel = functools.partial(_fused_forward_kernel, meta["layout"], Ip, H, O, S, Bp)
    vmem = lambda: pl.BlockSpec(memory_space=pltpu.MemorySpace.VMEM)
    res = pl.pallas_call(
        kernel,
        out_shape=jax.ShapeDtypeStruct((Bp, LANES), jnp.float32),
        in_specs=[vmem(), vmem(), vmem()],
        out_specs=vmem(),
        scratch_shapes=[pltpu.VMEM((S * Bp, H), jnp.float32)],    # layer-1 output slab
    )(x_pad, h0_pad, packed)
    out = res[:B, :O]
    hT = res[:B, O:O + H]
    return out, hT[None]


# ----------------------------- model glue -----------------------------

def make_positional_encoding(d_model, max_len=5000):
    position = jnp.arange(max_len, dtype=jnp.float32)[:, None]
    div_term = jnp.exp(jnp.arange(0, d_model, 2, dtype=jnp.float32)
                       * (-math.log(10000.0) / d_model))
    ang = position * div_term
    pe = jnp.zeros((max_len, d_model), jnp.float32)
    pe = pe.at[:, 0::2].set(jnp.sin(ang))
    pe = pe.at[:, 1::2].set(jnp.cos(ang))
    return pe                                    # (max_len, d_model)


# ----------------------------- pure-JAX reference -----------------------------

def reference_forward(x, hx, params, pe):
    def rnn_ref(xs, h0, w_ih, w_hh, b_ih, b_hh):
        def step(h, xt):
            hn = jnp.tanh(xt @ w_ih.T + b_ih + h @ w_hh.T + b_hh)
            return hn, hn
        hT, ys = lax.scan(step, h0, xs)
        return ys, hT

    S, B, _ = x.shape
    H = params["w_hh1"].shape[0]
    y1, h1 = rnn_ref(x, hx[0], params["w_ih1"], params["w_hh1"],
                     params["b_ih1"], params["b_hh1"])
    y1 = y1 + pe[None, :B, :]
    wq, wk, wv = (params["attn_in_w"][0:H], params["attn_in_w"][H:2 * H],
                  params["attn_in_w"][2 * H:3 * H])
    bq, bk, bv = (params["attn_in_b"][0:H], params["attn_in_b"][H:2 * H],
                  params["attn_in_b"][2 * H:3 * H])
    q = (y1 @ wq.T + bq) / jnp.sqrt(jnp.float32(H))
    k = y1 @ wk.T + bk
    v = y1 @ wv.T + bv
    s = jnp.einsum("sbh,tbh->bst", q, k)
    p = jax.nn.softmax(s, axis=-1)
    a = jnp.einsum("bst,tbh->sbh", p, v)
    attn = a @ params["attn_out_w"].T + params["attn_out_b"]
    y = y1 + attn
    y2, h2 = rnn_ref(y, h1, params["w_ih2"], params["w_hh2"],
                     params["b_ih2"], params["b_hh2"])
    out = jnp.exp(y2[-1] @ params["w_fc"].T + params["b_fc"])
    return out, h2[None]


# ----------------------------- main -----------------------------

if __name__ == "__main__":
    n_letters, n_hidden, n_categories = 8, 32, 4
    seq_len, batch = 8, 2

    key = jax.random.PRNGKey(0)
    ks = jax.random.split(key, 18)

    def u(k, shape, s=0.1):
        return jax.random.uniform(k, shape, jnp.float32, -s, s)

    params = {
        # RNN layer 1 (n_letters -> n_hidden)
        "w_ih1": u(ks[0], (n_hidden, n_letters)),
        "w_hh1": u(ks[1], (n_hidden, n_hidden)),
        "b_ih1": u(ks[2], (n_hidden,)),
        "b_hh1": u(ks[3], (n_hidden,)),
        # RNN layer 2 (n_hidden -> n_hidden)
        "w_ih2": u(ks[4], (n_hidden, n_hidden)),
        "w_hh2": u(ks[5], (n_hidden, n_hidden)),
        "b_ih2": u(ks[6], (n_hidden,)),
        "b_hh2": u(ks[7], (n_hidden,)),
        # MultiheadAttention (1 head)
        "attn_in_w": u(ks[8], (3 * n_hidden, n_hidden)),
        "attn_in_b": u(ks[9], (3 * n_hidden,)),
        "attn_out_w": u(ks[10], (n_hidden, n_hidden)),
        "attn_out_b": u(ks[11], (n_hidden,)),
        # fc head
        "w_fc": u(ks[12], (n_categories, n_hidden)),
        "b_fc": u(ks[13], (n_categories,)),
    }

    x = jax.random.normal(ks[14], (seq_len, batch, n_letters), jnp.float32)
    hx = jax.random.normal(ks[15], (1, batch, n_hidden), jnp.float32)
    pe = make_positional_encoding(n_hidden, max_len=5000)

    # One-time parameter packing (hoisted out of the per-call path).
    packed, meta = prepare_params(params, pe, batch, n_letters, n_hidden,
                                  n_categories, seq_len)

    fwd = jax.jit(functools.partial(rnn_hlr_forward, meta=meta))
    out, h = fwd(x, hx, packed)
    out = jax.block_until_ready(out)
    h = jax.block_until_ready(h)

    ref_out, ref_h = reference_forward(x, hx, params, pe)
    np.testing.assert_allclose(np.asarray(out), np.asarray(ref_out),
                               rtol=5e-2, atol=5e-2)
    np.testing.assert_allclose(np.asarray(h), np.asarray(ref_h),
                               rtol=5e-2, atol=5e-2)
    assert out.shape == (batch, n_categories) and h.shape == (1, batch, n_hidden)
    assert np.all(np.isfinite(np.asarray(out)))

    print("KERNEL_OK")
</pallas_src>

<mosaic_0001>
module attributes {stable_mosaic.version = 11 : i64} {
  func.func @_fused_forward_kernel(%arg0: memref<64x8xf32, #tpu.memory_space<vmem>>, %arg1: memref<8x32xf32, #tpu.memory_space<vmem>>, %arg2: memref<312x128xf32, #tpu.memory_space<vmem>>, %arg3: memref<8x128xf32, #tpu.memory_space<vmem>>, %arg4: memref<64x32xf32, #tpu.memory_space<vmem>>) attributes {dimension_semantics = [], scalar_prefetch = 0 : i64, scratch_operands = 1 : i64, tpu.core_type = #tpu.core_type<tc>} {
    %c0 = arith.constant 0 : index
    %c0_0 = arith.constant 0 : index
    %0 = vector.load %arg0[%c0, %c0_0] : memref<64x8xf32, #tpu.memory_space<vmem>>, vector<64x8xf32>
    %1 = arith.truncf %0 : vector<64x8xf32> to vector<64x8xbf16>
    %c0_1 = arith.constant 0 : index
    %c0_2 = arith.constant 0 : index
    %2 = vector.load %arg2[%c0_1, %c0_2] : memref<312x128xf32, #tpu.memory_space<vmem>>, vector<8x32xf32>
    %3 = arith.truncf %2 : vector<8x32xf32> to vector<8x32xbf16>
    %cst = arith.constant dense<0.000000e+00> : vector<64x32xf32>
    %4 = tpu.matmul %1, %3, %cst {dimension_numbers = #tpu.dot_dimension_numbers<[1], [0], [0], [1], [0, 0, 1, 1], [], []>} : vector<64x8xbf16>, vector<8x32xbf16>, vector<64x32xf32> -> vector<64x32xf32>
    %c208 = arith.constant 208 : index
    %c0_3 = arith.constant 0 : index
    %5 = vector.load %arg2[%c208, %c0_3] : memref<312x128xf32, #tpu.memory_space<vmem>>, vector<1x32xf32>
    %6 = vector.broadcast %5 : vector<1x32xf32> to vector<64x32xf32>
    %7 = arith.addf %4, %6 : vector<64x32xf32>
    %c8 = arith.constant 8 : index
    %c0_4 = arith.constant 0 : index
    %8 = vector.load %arg2[%c8, %c0_4] : memref<312x128xf32, #tpu.memory_space<vmem>>, vector<32x32xf32>
    %9 = arith.truncf %8 : vector<32x32xf32> to vector<32x32xbf16>
    %c200 = arith.constant 200 : index
    %c0_5 = arith.constant 0 : index
    %10 = vector.load %arg2[%c200, %c0_5] : memref<312x128xf32, #tpu.memory_space<vmem>>, vector<8x32xf32>
    %c0_6 = arith.constant 0 : index
    %c0_7 = arith.constant 0 : index
    %11 = vector.load %arg1[%c0_6, %c0_7] : memref<8x32xf32, #tpu.memory_space<vmem>>, vector<8x32xf32>
    %12 = vector.extract_strided_slice %7 {offsets = [0, 0], sizes = [8, 32], strides = [1, 1]} : vector<64x32xf32> to vector<8x32xf32>
    %13 = arith.truncf %11 : vector<8x32xf32> to vector<8x32xbf16>
    %cst_8 = arith.constant dense<0.000000e+00> : vector<8x32xf32>
    %14 = tpu.matmul %13, %9, %cst_8 {dimension_numbers = #tpu.dot_dimension_numbers<[1], [0], [0], [1], [0, 0, 1, 1], [], []>} : vector<8x32xbf16>, vector<32x32xbf16>, vector<8x32xf32> -> vector<8x32xf32>
    %15 = arith.addf %12, %14 : vector<8x32xf32>
    %16 = math.tanh %15 : vector<8x32xf32>
    %17 = arith.addf %16, %10 : vector<8x32xf32>
    %c0_9 = arith.constant 0 : index
    %c0_10 = arith.constant 0 : index
    %18 = vector.load %arg4[%c0_9, %c0_10] : memref<64x32xf32, #tpu.memory_space<vmem>>, vector<8x32xf32>
    tpu.vector_store %arg4[%c0_9, %c0_10], %17 {strides = array<i32>} : memref<64x32xf32, #tpu.memory_space<vmem>>, vector<8x32xf32>,
    %19 = vector.extract_strided_slice %7 {offsets = [8, 0], sizes = [8, 32], strides = [1, 1]} : vector<64x32xf32> to vector<8x32xf32>
    %20 = arith.truncf %16 : vector<8x32xf32> to vector<8x32xbf16>
    %cst_11 = arith.constant dense<0.000000e+00> : vector<8x32xf32>
    %21 = tpu.matmul %20, %9, %cst_11 {dimension_numbers = #tpu.dot_dimension_numbers<[1], [0], [0], [1], [0, 0, 1, 1], [], []>} : vector<8x32xbf16>, vector<32x32xbf16>, vector<8x32xf32> -> vector<8x32xf32>
    %22 = arith.addf %19, %21 : vector<8x32xf32>
    %23 = math.tanh %22 : vector<8x32xf32>
    %24 = arith.addf %23, %10 : vector<8x32xf32>
    %c8_12 = arith.constant 8 : index
    %c0_13 = arith.constant 0 : index
    %25 = vector.load %arg4[%c8_12, %c0_13] : memref<64x32xf32, #tpu.memory_space<vmem>>, vector<8x32xf32>
    tpu.vector_store %arg4[%c8_12, %c0_13], %24 {strides = array<i32>} : memref<64x32xf32, #tpu.memory_space<vmem>>, vector<8x32xf32>,
    %26 = vector.extract_strided_slice %7 {offsets = [16, 0], sizes = [8, 32], strides = [1, 1]} : vector<64x32xf32> to vector<8x32xf32>
    %27 = arith.truncf %23 : vector<8x32xf32> to vector<8x32xbf16>
    %cst_14 = arith.constant dense<0.000000e+00> : vector<8x32xf32>
    %28 = tpu.matmul %27, %9, %cst_14 {dimension_numbers = #tpu.dot_dimension_numbers<[1], [0], [0], [1], [0, 0, 1, 1], [], []>} : vector<8x32xbf16>, vector<32x32xbf16>, vector<8x32xf32> -> vector<8x32xf32>
    %29 = arith.addf %26, %28 : vector<8x32xf32>
    %30 = math.tanh %29 : vector<8x32xf32>
    %31 = arith.addf %30, %10 : vector<8x32xf32>
    %c16 = arith.constant 16 : index
    %c0_15 = arith.constant 0 : index
    %32 = vector.load %arg4[%c16, %c0_15] : memref<64x32xf32, #tpu.memory_space<vmem>>, vector<8x32xf32>
    tpu.vector_store %arg4[%c16, %c0_15], %31 {strides = array<i32>} : memref<64x32xf32, #tpu.memory_space<vmem>>, vector<8x32xf32>,
    %33 = vector.extract_strided_slice %7 {offsets = [24, 0], sizes = [8, 32], strides = [1, 1]} : vector<64x32xf32> to vector<8x32xf32>
    %34 = arith.truncf %30 : vector<8x32xf32> to vector<8x32xbf16>
    %cst_16 = arith.constant dense<0.000000e+00> : vector<8x32xf32>
    %35 = tpu.matmul %34, %9, %cst_16 {dimension_numbers = #tpu.dot_dimension_numbers<[1], [0], [0], [1], [0, 0, 1, 1], [], []>} : vector<8x32xbf16>, vector<32x32xbf16>, vector<8x32xf32> -> vector<8x32xf32>
    %36 = arith.addf %33, %35 : vector<8x32xf32>
    %37 = math.tanh %36 : vector<8x32xf32>
    %38 = arith.addf %37, %10 : vector<8x32xf32>
    %c24 = arith.constant 24 : index
    %c0_17 = arith.constant 0 : index
    %39 = vector.load %arg4[%c24, %c0_17] : memref<64x32xf32, #tpu.memory_space<vmem>>, vector<8x32xf32>
    tpu.vector_store %arg4[%c24, %c0_17], %38 {strides = array<i32>} : memref<64x32xf32, #tpu.memory_space<vmem>>, vector<8x32xf32>,
    %40 = vector.extract_strided_slice %7 {offsets = [32, 0], sizes = [8, 32], strides = [1, 1]} : vector<64x32xf32> to vector<8x32xf32>
    %41 = arith.truncf %37 : vector<8x32xf32> to vector<8x32xbf16>
    %cst_18 = arith.constant dense<0.000000e+00> : vector<8x32xf32>
    %42 = tpu.matmul %41, %9, %cst_18 {dimension_numbers = #tpu.dot_dimension_numbers<[1], [0], [0], [1], [0, 0, 1, 1], [], []>} : vector<8x32xbf16>, vector<32x32xbf16>, vector<8x32xf32> -> vector<8x32xf32>
    %43 = arith.addf %40, %42 : vector<8x32xf32>
    %44 = math.tanh %43 : vector<8x32xf32>
    %45 = arith.addf %44, %10 : vector<8x32xf32>
    %c32 = arith.constant 32 : index
    %c0_19 = arith.constant 0 : index
    %46 = vector.load %arg4[%c32, %c0_19] : memref<64x32xf32, #tpu.memory_space<vmem>>, vector<8x32xf32>
    tpu.vector_store %arg4[%c32, %c0_19], %45 {strides = array<i32>} : memref<64x32xf32, #tpu.memory_space<vmem>>, vector<8x32xf32>,
    %47 = vector.extract_strided_slice %7 {offsets = [40, 0], sizes = [8, 32], strides = [1, 1]} : vector<64x32xf32> to vector<8x32xf32>
    %48 = arith.truncf %44 : vector<8x32xf32> to vector<8x32xbf16>
    %cst_20 = arith.constant dense<0.000000e+00> : vector<8x32xf32>
    %49 = tpu.matmul %48, %9, %cst_20 {dimension_numbers = #tpu.dot_dimension_numbers<[1], [0], [0], [1], [0, 0, 1, 1], [], []>} : vector<8x32xbf16>, vector<32x32xbf16>, vector<8x32xf32> -> vector<8x32xf32>
    %50 = arith.addf %47, %49 : vector<8x32xf32>
    %51 = math.tanh %50 : vector<8x32xf32>
    %52 = arith.addf %51, %10 : vector<8x32xf32>
    %c40 = arith.constant 40 : index
    %c0_21 = arith.constant 0 : index
    %53 = vector.load %arg4[%c40, %c0_21] : memref<64x32xf32, #tpu.memory_space<vmem>>, vector<8x32xf32>
    tpu.vector_store %arg4[%c40, %c0_21], %52 {strides = array<i32>} : memref<64x32xf32, #tpu.memory_space<vmem>>, vector<8x32xf32>,
    %54 = vector.extract_strided_slice %7 {offsets = [48, 0], sizes = [8, 32], strides = [1, 1]} : vector<64x32xf32> to vector<8x32xf32>
    %55 = arith.truncf %51 : vector<8x32xf32> to vector<8x32xbf16>
    %cst_22 = arith.constant dense<0.000000e+00> : vector<8x32xf32>
    %56 = tpu.matmul %55, %9, %cst_22 {dimension_numbers = #tpu.dot_dimension_numbers<[1], [0], [0], [1], [0, 0, 1, 1], [], []>} : vector<8x32xbf16>, vector<32x32xbf16>, vector<8x32xf32> -> vector<8x32xf32>
    %57 = arith.addf %54, %56 : vector<8x32xf32>
    %58 = math.tanh %57 : vector<8x32xf32>
    %59 = arith.addf %58, %10 : vector<8x32xf32>
    %c48 = arith.constant 48 : index
    %c0_23 = arith.constant 0 : index
    %60 = vector.load %arg4[%c48, %c0_23] : memref<64x32xf32, #tpu.memory_space<vmem>>, vector<8x32xf32>
    tpu.vector_store %arg4[%c48, %c0_23], %59 {strides = array<i32>} : memref<64x32xf32, #tpu.memory_space<vmem>>, vector<8x32xf32>,
    %61 = vector.extract_strided_slice %7 {offsets = [56, 0], sizes = [8, 32], strides = [1, 1]} : vector<64x32xf32> to vector<8x32xf32>
    %62 = arith.truncf %58 : vector<8x32xf32> to vector<8x32xbf16>
    %cst_24 = arith.constant dense<0.000000e+00> : vector<8x32xf32>
    %63 = tpu.matmul %62, %9, %cst_24 {dimension_numbers = #tpu.dot_dimension_numbers<[1], [0], [0], [1], [0, 0, 1, 1], [], []>} : vector<8x32xbf16>, vector<32x32xbf16>, vector<8x32xf32> -> vector<8x32xf32>
    %64 = arith.addf %61, %63 : vector<8x32xf32>
    %65 = math.tanh %64 : vector<8x32xf32>
    %66 = arith.addf %65, %10 : vector<8x32xf32>
    %c56 = arith.constant 56 : index
    %c0_25 = arith.constant 0 : index
    %67 = vector.load %arg4[%c56, %c0_25] : memref<64x32xf32, #tpu.memory_space<vmem>>, vector<8x32xf32>
    tpu.vector_store %arg4[%c56, %c0_25], %66 {strides = array<i32>} : memref<64x32xf32, #tpu.memory_space<vmem>>, vector<8x32xf32>,
    %c0_26 = arith.constant 0 : index
    %c0_27 = arith.constant 0 : index
    %68 = vector.load %arg4[%c0_26, %c0_27] : memref<64x32xf32, #tpu.memory_space<vmem>>, vector<64x32xf32>
    %69 = arith.truncf %68 : vector<64x32xf32> to vector<64x32xbf16>
    %c40_28 = arith.constant 40 : index
    %c0_29 = arith.constant 0 : index
    %70 = vector.load %arg2[%c40_28, %c0_29] : memref<312x128xf32, #tpu.memory_space<vmem>>, vector<32x96xf32>
    %71 = arith.truncf %70 : vector<32x96xf32> to vector<32x96xbf16>
    %cst_30 = arith.constant dense<0.000000e+00> : vector<64x96xf32>
    %72 = tpu.matmul %69, %71, %cst_30 {dimension_numbers = #tpu.dot_dimension_numbers<[1], [0], [0], [1], [0, 0, 1, 1], [], []>} : vector<64x32xbf16>, vector<32x96xbf16>, vector<64x96xf32> -> vector<64x96xf32>
    %c216 = arith.constant 216 : index
    %c0_31 = arith.constant 0 : index
    %73 = vector.load %arg2[%c216, %c0_31] : memref<312x128xf32, #tpu.memory_space<vmem>>, vector<1x96xf32>
    %74 = vector.broadcast %73 : vector<1x96xf32> to vector<64x96xf32>
    %75 = arith.addf %72, %74 : vector<64x96xf32>
    %76 = vector.extract_strided_slice %75 {offsets = [0, 0], sizes = [64, 32], strides = [1, 1]} : vector<64x96xf32> to vector<64x32xf32>
    %cst_32 = arith.constant 0.176776692 : f32
    %77 = vector.broadcast %cst_32 : f32 to vector<64x32xf32>
    %78 = arith.mulf %76, %77 : vector<64x32xf32>
    %79 = arith.truncf %78 : vector<64x32xf32> to vector<64x32xbf16>
    %80 = vector.extract_strided_slice %75 {offsets = [0, 32], sizes = [64, 32], strides = [1, 1]} : vector<64x96xf32> to vector<64x32xf32>
    %81 = arith.truncf %80 : vector<64x32xf32> to vector<64x32xbf16>
    %82 = vector.extract_strided_slice %75 {offsets = [0, 64], sizes = [64, 32], strides = [1, 1]} : vector<64x96xf32> to vector<64x32xf32>
    %83 = arith.truncf %82 : vector<64x32xf32> to vector<64x32xbf16>
    %cst_33 = arith.constant dense<0.000000e+00> : vector<64x64xf32>
    %84 = tpu.matmul %79, %81, %cst_33 {dimension_numbers = #tpu.dot_dimension_numbers<[1], [1], [0], [0], [0, 0, 1, 0], [], []>} : vector<64x32xbf16>, vector<64x32xbf16>, vector<64x64xf32> -> vector<64x64xf32>
    %c248 = arith.constant 248 : index
    %c0_34 = arith.constant 0 : index
    %85 = vector.load %arg2[%c248, %c0_34] : memref<312x128xf32, #tpu.memory_space<vmem>>, vector<64x64xf32>
    %86 = arith.addf %84, %85 : vector<64x64xf32>
    %cst_35 = arith.constant dense<0xFF800000> : vector<64xf32>
    %87 = vector.multi_reduction <maximumf>, %86, %cst_35 [1] : vector<64x64xf32> to vector<64xf32>
    %88 = vector.shape_cast %87 : vector<64xf32> to vector<64x1xf32>
    %89 = vector.broadcast %88 : vector<64x1xf32> to vector<64x64xf32>
    %90 = arith.subf %86, %89 : vector<64x64xf32>
    %91 = math.exp %90 : vector<64x64xf32>
    %cst_36 = arith.constant dense<0.000000e+00> : vector<64xf32>
    %92 = vector.multi_reduction <add>, %91, %cst_36 [1] : vector<64x64xf32> to vector<64xf32>
    %93 = vector.shape_cast %92 : vector<64xf32> to vector<64x1xf32>
    %94 = tpu.reciprocal %93 {approx = true} : vector<64x1xf32> -> vector<64x1xf32>
    %95 = vector.broadcast %94 : vector<64x1xf32> to vector<64x64xf32>
    %96 = arith.mulf %91, %95 : vector<64x64xf32>
    %97 = arith.truncf %96 : vector<64x64xf32> to vector<64x64xbf16>
    %cst_37 = arith.constant dense<0.000000e+00> : vector<64x32xf32>
    %98 = tpu.matmul %97, %83, %cst_37 {dimension_numbers = #tpu.dot_dimension_numbers<[1], [0], [0], [1], [0, 0, 1, 1], [], []>} : vector<64x64xbf16>, vector<64x32xbf16>, vector<64x32xf32> -> vector<64x32xf32>
    %99 = arith.truncf %98 : vector<64x32xf32> to vector<64x32xbf16>
    %c72 = arith.constant 72 : index
    %c0_38 = arith.constant 0 : index
    %100 = vector.load %arg2[%c72, %c0_38] : memref<312x128xf32, #tpu.memory_space<vmem>>, vector<32x32xf32>
    %101 = arith.truncf %100 : vector<32x32xf32> to vector<32x32xbf16>
    %cst_39 = arith.constant dense<0.000000e+00> : vector<64x32xf32>
    %102 = tpu.matmul %99, %101, %cst_39 {dimension_numbers = #tpu.dot_dimension_numbers<[1], [0], [0], [1], [0, 0, 1, 1], [], []>} : vector<64x32xbf16>, vector<32x32xbf16>, vector<64x32xf32> -> vector<64x32xf32>
    %c224 = arith.constant 224 : index
    %c0_40 = arith.constant 0 : index
    %103 = vector.load %arg2[%c224, %c0_40] : memref<312x128xf32, #tpu.memory_space<vmem>>, vector<1x32xf32>
    %104 = vector.broadcast %103 : vector<1x32xf32> to vector<64x32xf32>
    %105 = arith.addf %102, %104 : vector<64x32xf32>
    %106 = arith.addf %68, %105 : vector<64x32xf32>
    %107 = arith.truncf %106 : vector<64x32xf32> to vector<64x32xbf16>
    %c104 = arith.constant 104 : index
    %c0_41 = arith.constant 0 : index
    %108 = vector.load %arg2[%c104, %c0_41] : memref<312x128xf32, #tpu.memory_space<vmem>>, vector<32x32xf32>
    %109 = arith.truncf %108 : vector<32x32xf32> to vector<32x32xbf16>
    %cst_42 = arith.constant dense<0.000000e+00> : vector<64x32xf32>
    %110 = tpu.matmul %107, %109, %cst_42 {dimension_numbers = #tpu.dot_dimension_numbers<[1], [0], [0], [1], [0, 0, 1, 1], [], []>} : vector<64x32xbf16>, vector<32x32xbf16>, vector<64x32xf32> -> vector<64x32xf32>
    %c232 = arith.constant 232 : index
    %c0_43 = arith.constant 0 : index
    %111 = vector.load %arg2[%c232, %c0_43] : memref<312x128xf32, #tpu.memory_space<vmem>>, vector<1x32xf32>
    %112 = vector.broadcast %111 : vector<1x32xf32> to vector<64x32xf32>
    %113 = arith.addf %110, %112 : vector<64x32xf32>
    %c136 = arith.constant 136 : index
    %c0_44 = arith.constant 0 : index
    %114 = vector.load %arg2[%c136, %c0_44] : memref<312x128xf32, #tpu.memory_space<vmem>>, vector<32x32xf32>
    %115 = arith.truncf %114 : vector<32x32xf32> to vector<32x32xbf16>
    %116 = vector.extract_strided_slice %113 {offsets = [0, 0], sizes = [8, 32], strides = [1, 1]} : vector<64x32xf32> to vector<8x32xf32>
    %117 = arith.truncf %65 : vector<8x32xf32> to vector<8x32xbf16>
    %cst_45 = arith.constant dense<0.000000e+00> : vector<8x32xf32>
    %118 = tpu.matmul %117, %115, %cst_45 {dimension_numbers = #tpu.dot_dimension_numbers<[1], [0], [0], [1], [0, 0, 1, 1], [], []>} : vector<8x32xbf16>, vector<32x32xbf16>, vector<8x32xf32> -> vector<8x32xf32>
    %119 = arith.addf %116, %118 : vector<8x32xf32>
    %120 = math.tanh %119 : vector<8x32xf32>
    %121 = vector.extract_strided_slice %113 {offsets = [8, 0], sizes = [8, 32], strides = [1, 1]} : vector<64x32xf32> to vector<8x32xf32>
    %122 = arith.truncf %120 : vector<8x32xf32> to vector<8x32xbf16>
    %cst_46 = arith.constant dense<0.000000e+00> : vector<8x32xf32>
    %123 = tpu.matmul %122, %115, %cst_46 {dimension_numbers = #tpu.dot_dimension_numbers<[1], [0], [0], [1], [0, 0, 1, 1], [], []>} : vector<8x32xbf16>, vector<32x32xbf16>, vector<8x32xf32> -> vector<8x32xf32>
    %124 = arith.addf %121, %123 : vector<8x32xf32>
    %125 = math.tanh %124 : vector<8x32xf32>
    %126 = vector.extract_strided_slice %113 {offsets = [16, 0], sizes = [8, 32], strides = [1, 1]} : vector<64x32xf32> to vector<8x32xf32>
    %127 = arith.truncf %125 : vector<8x32xf32> to vector<8x32xbf16>
    %cst_47 = arith.constant dense<0.000000e+00> : vector<8x32xf32>
    %128 = tpu.matmul %127, %115, %cst_47 {dimension_numbers = #tpu.dot_dimension_numbers<[1], [0], [0], [1], [0, 0, 1, 1], [], []>} : vector<8x32xbf16>, vector<32x32xbf16>, vector<8x32xf32> -> vector<8x32xf32>
    %129 = arith.addf %126, %128 : vector<8x32xf32>
    %130 = math.tanh %129 : vector<8x32xf32>
    %131 = vector.extract_strided_slice %113 {offsets = [24, 0], sizes = [8, 32], strides = [1, 1]} : vector<64x32xf32> to vector<8x32xf32>
    %132 = arith.truncf %130 : vector<8x32xf32> to vector<8x32xbf16>
    %cst_48 = arith.constant dense<0.000000e+00> : vector<8x32xf32>
    %133 = tpu.matmul %132, %115, %cst_48 {dimension_numbers = #tpu.dot_dimension_numbers<[1], [0], [0], [1], [0, 0, 1, 1], [], []>} : vector<8x32xbf16>, vector<32x32xbf16>, vector<8x32xf32> -> vector<8x32xf32>
    %134 = arith.addf %131, %133 : vector<8x32xf32>
    %135 = math.tanh %134 : vector<8x32xf32>
    %136 = vector.extract_strided_slice %113 {offsets = [32, 0], sizes = [8, 32], strides = [1, 1]} : vector<64x32xf32> to vector<8x32xf32>
    %137 = arith.truncf %135 : vector<8x32xf32> to vector<8x32xbf16>
    %cst_49 = arith.constant dense<0.000000e+00> : vector<8x32xf32>
    %138 = tpu.matmul %137, %115, %cst_49 {dimension_numbers = #tpu.dot_dimension_numbers<[1], [0], [0], [1], [0, 0, 1, 1], [], []>} : vector<8x32xbf16>, vector<32x32xbf16>, vector<8x32xf32> -> vector<8x32xf32>
    %139 = arith.addf %136, %138 : vector<8x32xf32>
    %140 = math.tanh %139 : vector<8x32xf32>
    %141 = vector.extract_strided_slice %113 {offsets = [40, 0], sizes = [8, 32], strides = [1, 1]} : vector<64x32xf32> to vector<8x32xf32>
    %142 = arith.truncf %140 : vector<8x32xf32> to vector<8x32xbf16>
    %cst_50 = arith.constant dense<0.000000e+00> : vector<8x32xf32>
    %143 = tpu.matmul %142, %115, %cst_50 {dimension_numbers = #tpu.dot_dimension_numbers<[1], [0], [0], [1], [0, 0, 1, 1], [], []>} : vector<8x32xbf16>, vector<32x32xbf16>, vector<8x32xf32> -> vector<8x32xf32>
    %144 = arith.addf %141, %143 : vector<8x32xf32>
    %145 = math.tanh %144 : vector<8x32xf32>
    %146 = vector.extract_strided_slice %113 {offsets = [48, 0], sizes = [8, 32], strides = [1, 1]} : vector<64x32xf32> to vector<8x32xf32>
    %147 = arith.truncf %145 : vector<8x32xf32> to vector<8x32xbf16>
    %cst_51 = arith.constant dense<0.000000e+00> : vector<8x32xf32>
    %148 = tpu.matmul %147, %115, %cst_51 {dimension_numbers = #tpu.dot_dimension_numbers<[1], [0], [0], [1], [0, 0, 1, 1], [], []>} : vector<8x32xbf16>, vector<32x32xbf16>, vector<8x32xf32> -> vector<8x32xf32>
    %149 = arith.addf %146, %148 : vector<8x32xf32>
    %150 = math.tanh %149 : vector<8x32xf32>
    %151 = vector.extract_strided_slice %113 {offsets = [56, 0], sizes = [8, 32], strides = [1, 1]} : vector<64x32xf32> to vector<8x32xf32>
    %152 = arith.truncf %150 : vector<8x32xf32> to vector<8x32xbf16>
    %cst_52 = arith.constant dense<0.000000e+00> : vector<8x32xf32>
    %153 = tpu.matmul %152, %115, %cst_52 {dimension_numbers = #tpu.dot_dimension_numbers<[1], [0], [0], [1], [0, 0, 1, 1], [], []>} : vector<8x32xbf16>, vector<32x32xbf16>, vector<8x32xf32> -> vector<8x32xf32>
    %154 = arith.addf %151, %153 : vector<8x32xf32>
    %155 = math.tanh %154 : vector<8x32xf32>
    %156 = arith.truncf %155 : vector<8x32xf32> to vector<8x32xbf16>
    %c168 = arith.constant 168 : index
    %c0_53 = arith.constant 0 : index
    %157 = vector.load %arg2[%c168, %c0_53] : memref<312x128xf32, #tpu.memory_space<vmem>>, vector<32x128xf32>
    %158 = arith.truncf %157 : vector<32x128xf32> to vector<32x128xbf16>
    %cst_54 = arith.constant dense<0.000000e+00> : vector<8x128xf32>
    %159 = tpu.matmul %156, %158, %cst_54 {dimension_numbers = #tpu.dot_dimension_numbers<[1], [0], [0], [1], [0, 0, 1, 1], [], []>} : vector<8x32xbf16>, vector<32x128xbf16>, vector<8x128xf32> -> vector<8x128xf32>
    %c240 = arith.constant 240 : index
    %c0_55 = arith.constant 0 : index
    %160 = vector.load %arg2[%c240, %c0_55] : memref<312x128xf32, #tpu.memory_space<vmem>>, vector<1x128xf32>
    %161 = vector.broadcast %160 : vector<1x128xf32> to vector<8x128xf32>
    %162 = arith.addf %159, %161 : vector<8x128xf32>
    %163 = tpu.iota {dimensions = array<i32: 1>} : vector<8x128xi32>
    %c4_i32 = arith.constant 4 : i32
    %164 = vector.broadcast %c4_i32 : i32 to vector<8x128xi32>
    %165 = arith.cmpi slt, %163, %164 : vector<8x128xi32>
    %166 = math.exp %162 : vector<8x128xf32>
    %167 = arith.select %165, %166, %162 : vector<8x128xi1>, vector<8x128xf32>
    %c0_56 = arith.constant 0 : index
    %c0_57 = arith.constant 0 : index
    %168 = vector.load %arg3[%c0_56, %c0_57] : memref<8x128xf32, #tpu.memory_space<vmem>>, vector<8x128xf32>
    tpu.vector_store %arg3[%c0_56, %c0_57], %167 {strides = array<i32>} : memref<8x128xf32, #tpu.memory_space<vmem>>, vector<8x128xf32>,
    return
  }
}

</mosaic_0001>

<llo_original>
// kernel: rnn_hlr_forward.1
$region0: #{rnn_hlr_forward.1}
  #allocation0 [shape = 'u32[]', space=smem, size = 0x4, offset = 0x4, fixed_abs, tag = 'smem constant byte address 0x4 - core index']
  #allocation1 [shape = 'u32[72,128]{1,0:T(1,128)}', space=vmem, size = 0x9000, scoped, tag = 'internal scratch']
  #allocation2 [shape = 'f32[64,32]{1,0:T(8,128)}', space=vmem, size = 0x8000, scoped, tag = 'scratch operand']
  %s0 = inlined_call_operand.vmem [shape: f32[64,8], index: 0, kind: input, shape index: {}]
  %s1 = inlined_call_operand.vmem [shape: f32[8,32], index: 1, kind: input, shape index: {}]
  %s2 = inlined_call_operand.hbm [shape: f32[312,128], index: 2, kind: input, shape index: {}]
  %s3 = inlined_call_operand.vmem [shape: f32[8,128], index: 3, kind: output, shape index: {}]
  %s4 = sld [smem:[#allocation0]]
  $region26: #{rnn_hlr_forward.1} parent=0
    _
  %s6 = ssub.s32 1, %s4
  %s7 = scalar_select 0, %s6, %s4
  $region1: #{rnn_hlr_forward.1} parent=0
    #allocation3 [shape = 'u8[159744]{0}', space=vmem, size = 0x27000, scoped, tag = 'input window, operand 2, single buffered']
    #allocation4 [shape = 's32[1]{0}', space=sflag, size = 0x4, scoped, tag = 'scoped memory for rnn_hlr_forward.1']
    %8 = vsyncpa [#allocation4], 0
    // Predicated region
    $region2: #{rnn_hlr_forward.1} parent=1 // pred_check
      _
    $region3: #{rnn_hlr_forward.1} parent=1 // pred_check_branch
      %10 = sbr.rel (0) target = $region5
    $region4: #{rnn_hlr_forward.1} parent=1 // pred_region
      _
    $region5: #{rnn_hlr_forward.1} parent=1 // pred_fallthru
      _
    // Predicated region
    $region6: #{rnn_hlr_forward.1} parent=1 // pred_check
      _
    $region7: #{rnn_hlr_forward.1} parent=1 // pred_check_branch
      %12 = sbr.rel (0) target = $region9
    $region8: #{rnn_hlr_forward.1} parent=1 // pred_region
      _
    $region9: #{rnn_hlr_forward.1} parent=1 // pred_fallthru
      _
    // Predicated region
    $region10: #{rnn_hlr_forward.1} parent=1 // pred_check
      _
    $region11: #{rnn_hlr_forward.1} parent=1 // pred_check_branch
      %14 = sbr.rel (0) target = $region13
    $region12: #{rnn_hlr_forward.1} parent=1 // pred_region
      %16 = vsyncadd [#allocation4], 0
      %s17 = sshll.u32 %s2, 4
      %s18 = int_to_ptr.hbm [resolvable:$true] %s17
      %s19 = sshll.u32 [#allocation3], 4
      %s20 = int_to_ptr.vmem [resolvable:$true] %s19
      %25 = dma.hbm_to_vmem [thread:$0]  %s18, 4992, %s20, [#allocation4], 128, 128, 8
    $region13: #{rnn_hlr_forward.1} parent=1 // pred_fallthru
      _
    // Predicated region
    $region14: #{rnn_hlr_forward.1} parent=1 // pred_check
      _
    $region15: #{rnn_hlr_forward.1} parent=1 // pred_check_branch
      %27 = sbr.rel (0) target = $region17
    $region16: #{rnn_hlr_forward.1} parent=1 // pred_region
      %29 = dma.done [#allocation4], 4992
    $region17: #{rnn_hlr_forward.1} parent=1 // pred_fallthru
      _
    %v31 = vld [vmem:[%s0] sm:$0xff]
    %v32 = vld [vmem:[%s0 + $0x8] sm:$0xff]
    %v33 = vld [vmem:[%s0 + $0x10] sm:$0xff]
    %v34 = vld [vmem:[%s0 + $0x18] sm:$0xff]
    %v35 = vld [vmem:[%s0 + $0x20] sm:$0xff]
    %v36 = vld [vmem:[%s0 + $0x28] sm:$0xff]
    %v37 = vld [vmem:[%s0 + $0x30] sm:$0xff]
    %v38 = vld [vmem:[%s0 + $0x38] sm:$0xff]
    %v39 = vpack.c.bf16 %v32, %v31
    %v40 = vpack.c.bf16 %v34, %v33
    %v41 = vpack.c.bf16 %v36, %v35
    %v42 = vpack.c.bf16 %v38, %v37
    %v43 = vld [vmem:[#allocation3] sm:$0xff]
    %v44 = vpack.c.bf16 %v43, %v43
    %v45 = vld [vmem:[#allocation3 + $0xd0] sm:$0x1]
    %v46 = vperm.slane %v45, 0
    %vm47 = vcmask 64512
    %v49 = vsel %vm47, %v39, 0
    %v52 = vsel %vm47, %v40, 0
    %v55 = vsel %vm47, %v41, 0
    %v58 = vsel %vm47, %v42, 0
    %vm60 = vcmask 1043456
    %v62 = vsel %vm60, %v44, 0
    %64 = vmatpush.bf16.msra.mxu0 0
    %65 = vmatpush.bf16.msra.mxu0 0
    %66 = vmatpush.bf16.msra.mxu0 0
    %67 = vmatpush.bf16.msra.mxu0 0
    %68 = vmatpush.bf16.msra.mxu0 0
    %69 = vmatpush.bf16.msra.mxu0 0
    %70 = vmatpush.bf16.msra.mxu0 0
    %71 = vmatpush.bf16.msra.mxu0 %v62
    %72 = vmatmul.bf16.gmra.mxu0 %v49
    %v73 = vpop.f32.mrf.mxu0
    %v74 = vadd.f32 %v46, %v73
    %v75 = vpop.f32.mrf.mxu0
    %v76 = vadd.f32 %v46, %v75
    %77 = vmatmul.bf16.gmra.mxu0 %v52
    %v78 = vpop.f32.mrf.mxu0
    %v79 = vadd.f32 %v46, %v78
    %v80 = vpop.f32.mrf.mxu0
    %v81 = vadd.f32 %v46, %v80
    %82 = vmatmul.bf16.gmra.mxu0 %v55
    %v83 = vpop.f32.mrf.mxu0
    %v84 = vadd.f32 %v46, %v83
    %v85 = vpop.f32.mrf.mxu0
    %v86 = vadd.f32 %v46, %v85
    %87 = vmatmul.bf16.gmra.mxu0 %v58
    %v88 = vpop.f32.mrf.mxu0
    %v89 = vadd.f32 %v46, %v88
    %v90 = vpop.f32.mrf.mxu0
    %v91 = vadd.f32 %v46, %v90
    %92 = vdwg.mxu0
    %v93 = vld [vmem:[#allocation3 + $0x8] sm:$0xff]
    %v94 = vld [vmem:[#allocation3 + $0x10] sm:$0xff]
    %v95 = vld [vmem:[#allocation3 + $0x18] sm:$0xff]
    %v96 = vld [vmem:[#allocation3 + $0x20] sm:$0xff]
    %v97 = vpack.c.bf16 %v94, %v93
    %v98 = vpack.c.bf16 %v96, %v95
    %v99 = vld [vmem:[#allocation3 + $0xc8] sm:$0xff]
    %v100 = vld [vmem:[%s1] sm:$0xff]
    %v101 = vpack.c.bf16 %v100, %v100
    %vm102 = vcmask 261120
    %v104 = vsel %vm102, %v101, 0
    %106 = vmatpush.bf16.msra.mxu0 0
    %107 = vmatpush.bf16.msra.mxu0 0
    %108 = vmatpush.bf16.msra.mxu0 0
    %109 = vmatpush.bf16.msra.mxu0 0
    %110 = vmatpush.bf16.msra.mxu0 0
    %111 = vmatpush.bf16.msra.mxu0 0
    %112 = vmatpush.bf16.msra.mxu0 %v98
    %113 = vmatpush.bf16.msra.mxu0 %v97
    %114 = vmatmul.bf16.gmra.mxu0 %v104
    %v115 = vpop.f32.mrf.mxu0
    %v116 = vadd.f32 0.0, %v115
    %v117 = vpop.f32.mrf.mxu0
    %118 = vdwg.mxu0
    %v119 = vadd.f32 %v74, %v116
    %v120 = vtanh.pop %v119
    %v121 = vadd.f32 %v120, %v99
    %122 = vst.msk [vmem:[#allocation2] sm:$0xff] %vm102, %v121
    %v123 = vpack.c.bf16 %v120, %v120
    %v125 = vsel %vm102, %v123, 0
    %127 = vmatpush.bf16.msra.mxu0 0
    %128 = vmatpush.bf16.msra.mxu0 0
    %129 = vmatpush.bf16.msra.mxu0 0
    %130 = vmatpush.bf16.msra.mxu0 0
    %131 = vmatpush.bf16.msra.mxu0 0
    %132 = vmatpush.bf16.msra.mxu0 0
    %133 = vmatpush.bf16.msra.mxu0 %v98
    %134 = vmatpush.bf16.msra.mxu0 %v97
    %135 = vmatmul.bf16.gmra.mxu0 %v125
    %v136 = vpop.f32.mrf.mxu0
    %v137 = vadd.f32 0.0, %v136
    %v138 = vpop.f32.mrf.mxu0
    %139 = vdwg.mxu0
    %v140 = vadd.f32 %v76, %v137
    %v141 = vtanh.pop %v140
    %v142 = vadd.f32 %v141, %v99
    %143 = vst.msk [vmem:[#allocation2 + $0x8] sm:$0xff] %vm102, %v142
    %v144 = vpack.c.bf16 %v141, %v141
    %v146 = vsel %vm102, %v144, 0
    %148 = vmatpush.bf16.msra.mxu0 0
    %149 = vmatpush.bf16.msra.mxu0 0
    %150 = vmatpush.bf16.msra.mxu0 0
    %151 = vmatpush.bf16.msra.mxu0 0
    %152 = vmatpush.bf16.msra.mxu0 0
    %153 = vmatpush.bf16.msra.mxu0 0
    %154 = vmatpush.bf16.msra.mxu0 %v98
    %155 = vmatpush.bf16.msra.mxu0 %v97
    %156 = vmatmul.bf16.gmra.mxu0 %v146
    %v157 = vpop.f32.mrf.mxu0
    %v158 = vadd.f32 0.0, %v157
    %v159 = vpop.f32.mrf.mxu0
    %160 = vdwg.mxu0
    %v161 = vadd.f32 %v79, %v158
    %v162 = vtanh.pop %v161
    %v163 = vadd.f32 %v162, %v99
    %164 = vst.msk [vmem:[#allocation2 + $0x10] sm:$0xff] %vm102, %v163
    %v165 = vpack.c.bf16 %v162, %v162
    %v167 = vsel %vm102, %v165, 0
    %169 = vmatpush.bf16.msra.mxu0 0
    %170 = vmatpush.bf16.msra.mxu0 0
    %171 = vmatpush.bf16.msra.mxu0 0
    %172 = vmatpush.bf16.msra.mxu0 0
    %173 = vmatpush.bf16.msra.mxu0 0
    %174 = vmatpush.bf16.msra.mxu0 0
    %175 = vmatpush.bf16.msra.mxu0 %v98
    %176 = vmatpush.bf16.msra.mxu0 %v97
    %177 = vmatmul.bf16.gmra.mxu0 %v167
    %v178 = vpop.f32.mrf.mxu0
    %v179 = vadd.f32 0.0, %v178
    %v180 = vpop.f32.mrf.mxu0
    %181 = vdwg.mxu0
    %v182 = vadd.f32 %v81, %v179
    %v183 = vtanh.pop %v182
    %v184 = vadd.f32 %v183, %v99
    %185 = vst.msk [vmem:[#allocation2 + $0x18] sm:$0xff] %vm102, %v184
    %v186 = vpack.c.bf16 %v183, %v183
    %v188 = vsel %vm102, %v186, 0
    %190 = vmatpush.bf16.msra.mxu0 0
    %191 = vmatpush.bf16.msra.mxu0 0
    %192 = vmatpush.bf16.msra.mxu0 0
    %193 = vmatpush.bf16.msra.mxu0 0
    %194 = vmatpush.bf16.msra.mxu0 0
    %195 = vmatpush.bf16.msra.mxu0 0
    %196 = vmatpush.bf16.msra.mxu0 %v98
    %197 = vmatpush.bf16.msra.mxu0 %v97
    %198 = vmatmul.bf16.gmra.mxu0 %v188
    %v199 = vpop.f32.mrf.mxu0
    %v200 = vadd.f32 0.0, %v199
    %v201 = vpop.f32.mrf.mxu0
    %202 = vdwg.mxu0
    %v203 = vadd.f32 %v84, %v200
    %v204 = vtanh.pop %v203
    %v205 = vadd.f32 %v204, %v99
    %206 = vst.msk [vmem:[#allocation2 + $0x20] sm:$0xff] %vm102, %v205
    %v207 = vpack.c.bf16 %v204, %v204
    %v209 = vsel %vm102, %v207, 0
    %211 = vmatpush.bf16.msra.mxu0 0
    %212 = vmatpush.bf16.msra.mxu0 0
    %213 = vmatpush.bf16.msra.mxu0 0
    %214 = vmatpush.bf16.msra.mxu0 0
    %215 = vmatpush.bf16.msra.mxu0 0
    %216 = vmatpush.bf16.msra.mxu0 0
    %217 = vmatpush.bf16.msra.mxu0 %v98
    %218 = vmatpush.bf16.msra.mxu0 %v97
    %219 = vmatmul.bf16.gmra.mxu0 %v209
    %v220 = vpop.f32.mrf.mxu0
    %v221 = vadd.f32 0.0, %v220
    %v222 = vpop.f32.mrf.mxu0
    %223 = vdwg.mxu0
    %v224 = vadd.f32 %v86, %v221
    %v225 = vtanh.pop %v224
    %v226 = vadd.f32 %v225, %v99
    %227 = vst.msk [vmem:[#allocation2 + $0x28] sm:$0xff] %vm102, %v226
    %v228 = vpack.c.bf16 %v225, %v225
    %v230 = vsel %vm102, %v228, 0
    %232 = vmatpush.bf16.msra.mxu0 0
    %233 = vmatpush.bf16.msra.mxu0 0
    %234 = vmatpush.bf16.msra.mxu0 0
    %235 = vmatpush.bf16.msra.mxu0 0
    %236 = vmatpush.bf16.msra.mxu0 0
    %237 = vmatpush.bf16.msra.mxu0 0
    %238 = vmatpush.bf16.msra.mxu0 %v98
    %239 = vmatpush.bf16.msra.mxu0 %v97
    %240 = vmatmul.bf16.gmra.mxu0 %v230
    %v241 = vpop.f32.mrf.mxu0
    %v242 = vadd.f32 0.0, %v241
    %v243 = vpop.f32.mrf.mxu0
    %244 = vdwg.mxu0
    %v245 = vadd.f32 %v89, %v242
    %v246 = vtanh.pop %v245
    %v247 = vadd.f32 %v246, %v99
    %248 = vst.msk [vmem:[#allocation2 + $0x30] sm:$0xff] %vm102, %v247
    %v249 = vpack.c.bf16 %v246, %v246
    %v251 = vsel %vm102, %v249, 0
    %253 = vmatpush.bf16.msra.mxu0 0
    %254 = vmatpush.bf16.msra.mxu0 0
    %255 = vmatpush.bf16.msra.mxu0 0
    %256 = vmatpush.bf16.msra.mxu0 0
    %257 = vmatpush.bf16.msra.mxu0 0
    %258 = vmatpush.bf16.msra.mxu0 0
    %259 = vmatpush.bf16.msra.mxu0 %v98
    %260 = vmatpush.bf16.msra.mxu0 %v97
    %261 = vmatmul.bf16.gmra.mxu0 %v251
    %v262 = vpop.f32.mrf.mxu0
    %v263 = vadd.f32 0.0, %v262
    %v264 = vpop.f32.mrf.mxu0
    %265 = vdwg.mxu0
    %v266 = vadd.f32 %v91, %v263
    %v267 = vtanh.pop %v266
    %v268 = vadd.f32 %v267, %v99
    %269 = vst.msk [vmem:[#allocation2 + $0x38] sm:$0xff] %vm102, %v268
    %v270 = vld [vmem:[#allocation2] sm:$0xff]
    %v271 = vld [vmem:[#allocation2 + $0x8] sm:$0xff]
    %v272 = vld [vmem:[#allocation2 + $0x10] sm:$0xff]
    %v273 = vld [vmem:[#allocation2 + $0x18] sm:$0xff]
    %v274 = vld [vmem:[#allocation2 + $0x20] sm:$0xff]
    %v275 = vld [vmem:[#allocation2 + $0x28] sm:$0xff]
    %v276 = vld [vmem:[#allocation2 + $0x30] sm:$0xff]
    %v277 = vld [vmem:[#allocation2 + $0x38] sm:$0xff]
    %v278 = vpack.c.bf16 %v271, %v270
    %v279 = vpack.c.bf16 %v273, %v272
    %v280 = vpack.c.bf16 %v275, %v274
    %v281 = vpack.c.bf16 %v277, %v276
    %v282 = vld [vmem:[#allocation3 + $0x28] sm:$0xff]
    %v283 = vld [vmem:[#allocation3 + $0x30] sm:$0xff]
    %v284 = vld [vmem:[#allocation3 + $0x38] sm:$0xff]
    %v285 = vld [vmem:[#allocation3 + $0x40] sm:$0xff]
    %v286 = vpack.c.bf16 %v283, %v282
    %v287 = vpack.c.bf16 %v285, %v284
    %v288 = vld [vmem:[#allocation3 + $0xd8] sm:$0x1]
    %v289 = vperm.slane %v288, 0
    %v291 = vsel %vm102, %v278, 0
    %v294 = vsel %vm102, %v279, 0
    %v297 = vsel %vm102, %v280, 0
    %v300 = vsel %vm102, %v281, 0
    %302 = vmatpush.bf16.msra.mxu0 0
    %303 = vmatpush.bf16.msra.mxu0 0
    %304 = vmatpush.bf16.msra.mxu0 0
    %305 = vmatpush.bf16.msra.mxu0 0
    %306 = vmatpush.bf16.msra.mxu0 0
    %307 = vmatpush.bf16.msra.mxu0 0
    %308 = vmatpush.bf16.msra.mxu0 %v287
    %309 = vmatpush.bf16.msra.mxu0 %v286
    %310 = vmatmul.bf16.gmra.mxu0 %v291
    %v311 = vpop.f32.mrf.mxu0
    %v312 = vadd.f32 %v289, %v311
    %v313 = vpop.f32.mrf.mxu0
    %v314 = vadd.f32 %v289, %v313
    %315 = vmatmul.bf16.gmra.mxu0 %v294
    %v316 = vpop.f32.mrf.mxu0
    %v317 = vadd.f32 %v289, %v316
    %v318 = vpop.f32.mrf.mxu0
    %v319 = vadd.f32 %v289, %v318
    %320 = vmatmul.bf16.gmra.mxu0 %v297
    %v321 = vpop.f32.mrf.mxu0
    %v322 = vadd.f32 %v289, %v321
    %v323 = vpop.f32.mrf.mxu0
    %v324 = vadd.f32 %v289, %v323
    %325 = vmatmul.bf16.gmra.mxu0 %v300
    %v326 = vpop.f32.mrf.mxu0
    %v327 = vadd.f32 %v289, %v326
    %v328 = vpop.f32.mrf.mxu0
    %v329 = vadd.f32 %v289, %v328
    %330 = vdwg.mxu0
    %v331 = vmul.f32 %v312, 0.17677669
    %v332 = vmul.f32 %v314, 0.17677669
    %v333 = vmul.f32 %v317, 0.17677669
    %v334 = vmul.f32 %v319, 0.17677669
    %v335 = vmul.f32 %v322, 0.17677669
    %v336 = vmul.f32 %v324, 0.17677669
    %v337 = vmul.f32 %v327, 0.17677669
    %v338 = vmul.f32 %v329, 0.17677669
    %v339 = vpack.c.bf16 %v332, %v331
    %v340 = vpack.c.bf16 %v334, %v333
    %v341 = vpack.c.bf16 %v336, %v335
    %v342 = vpack.c.bf16 %v338, %v337
    %v343 = vpack.c.bf16 %v314, %v312
    %v344 = vpack.c.bf16 %v319, %v317
    %v345 = vpack.c.bf16 %v324, %v322
    %v346 = vpack.c.bf16 %v329, %v327
    %v347 = vld [vmem:[#allocation3 + $0xf8] sm:$0xff]
    %v348 = vld [vmem:[#allocation3 + $0x100] sm:$0xff]
    %v349 = vld [vmem:[#allocation3 + $0x108] sm:$0xff]
    %v350 = vld [vmem:[#allocation3 + $0x110] sm:$0xff]
    %v351 = vld [vmem:[#allocation3 + $0x118] sm:$0xff]
    %v352 = vld [vmem:[#allocation3 + $0x120] sm:$0xff]
    %v353 = vld [vmem:[#allocation3 + $0x128] sm:$0xff]
    %v354 = vld [vmem:[#allocation3 + $0x130] sm:$0xff]
    %359 = vrot.lane.b32.xlu0 %v343, 96
    %v360 = vpop.permute.xlu0 %359
    %361 = vrot.lane.b32.xlu0 %v344, 96
    %v362 = vpop.permute.xlu0 %361
    %363 = vrot.lane.b32.xlu0 %v345, 96
    %v364 = vpop.permute.xlu0 %363
    %365 = vrot.lane.b32.xlu0 %v346, 96
    %v366 = vpop.permute.xlu0 %365
    %v368 = vsel %vm102, %v339, 0
    %v371 = vsel %vm102, %v340, 0
    %v374 = vsel %vm102, %v341, 0
    %v377 = vsel %vm102, %v342, 0
    %v380 = vsel %vm102, %v360, 0
    %v383 = vsel %vm102, %v362, 0
    %v386 = vsel %vm102, %v364, 0
    %v389 = vsel %vm102, %v366, 0
    %391 = vmatpush.bf16.xpose.msra.mxu0 0
    %392 = vmatpush.bf16.xpose.msra.mxu0 0
    %393 = vmatpush.bf16.xpose.msra.mxu0 0
    %394 = vmatpush.bf16.xpose.msra.mxu0 0
    %395 = vmatpush.bf16.xpose.msra.mxu0 %v389
    %396 = vmatpush.bf16.xpose.msra.mxu0 %v386
    %397 = vmatpush.bf16.xpose.msra.mxu0 %v383
    %398 = vmatpush.bf16.xpose.msra.mxu0 %v380
    %399 = vmatmul.bf16.gmra.mxu0 %v368
    %v400 = vpop.f32.mrf.mxu0
    %v401 = vadd.f32 %v347, %v400
    %v402 = vpop.f32.mrf.mxu0
    %v403 = vadd.f32 %v348, %v402
    %404 = vmatmul.bf16.gmra.mxu0 %v371
    %v405 = vpop.f32.mrf.mxu0
    %v406 = vadd.f32 %v349, %v405
    %v407 = vpop.f32.mrf.mxu0
    %v408 = vadd.f32 %v350, %v407
    %409 = vmatmul.bf16.gmra.mxu0 %v374
    %v410 = vpop.f32.mrf.mxu0
    %v411 = vadd.f32 %v351, %v410
    %v412 = vpop.f32.mrf.mxu0
    %v413 = vadd.f32 %v352, %v412
    %414 = vmatmul.bf16.gmra.mxu0 %v377
    %v415 = vpop.f32.mrf.mxu0
    %v416 = vadd.f32 %v353, %v415
    %v417 = vpop.f32.mrf.mxu0
    %v418 = vadd.f32 %v354, %v417
    %419 = vdwg.mxu0
    %vm420 = vcmask 523264
    %v421 = vsel %vm420, %v401, -inf
    %422 = vmax.xlane.f32.xlu0 %v421
    %v423 = vpop.xlane.xlu0 %422
    %v424 = vsel %vm420, %v403, -inf
    %425 = vmax.xlane.f32.xlu0 %v424
    %v426 = vpop.xlane.xlu0 %425
    %v427 = vsel %vm420, %v406, -inf
    %428 = vmax.xlane.f32.xlu0 %v427
    %v429 = vpop.xlane.xlu0 %428
    %v430 = vsel %vm420, %v408, -inf
    %431 = vmax.xlane.f32.xlu0 %v430
    %v432 = vpop.xlane.xlu0 %431
    %v433 = vsel %vm420, %v411, -inf
    %434 = vmax.xlane.f32.xlu0 %v433
    %v435 = vpop.xlane.xlu0 %434
    %v436 = vsel %vm420, %v413, -inf
    %437 = vmax.xlane.f32.xlu0 %v436
    %v438 = vpop.xlane.xlu0 %437
    %v439 = vsel %vm420, %v416, -inf
    %440 = vmax.xlane.f32.xlu0 %v439
    %v441 = vpop.xlane.xlu0 %440
    %v442 = vsel %vm420, %v418, -inf
    %443 = vmax.xlane.f32.xlu0 %v442
    %v444 = vpop.xlane.xlu0 %443
    %v445 = vsub.f32 %v401, %v423
    %v446 = vsub.f32 %v403, %v426
    %v447 = vsub.f32 %v406, %v429
    %v448 = vsub.f32 %v408, %v432
    %v449 = vsub.f32 %v411, %v435
    %v450 = vsub.f32 %v413, %v438
    %v451 = vsub.f32 %v416, %v441
    %v452 = vsub.f32 %v418, %v444
    %v453 = vmul.f32 %v445, 1.442695
    %v454 = vpow.pop %v453
    %v455 = vmul.f32 %v446, 1.442695
    %v456 = vpow.pop %v455
    %v457 = vmul.f32 %v447, 1.442695
    %v458 = vpow.pop %v457
    %v459 = vmul.f32 %v448, 1.442695
    %v460 = vpow.pop %v459
    %v461 = vmul.f32 %v449, 1.442695
    %v462 = vpow.pop %v461
    %v463 = vmul.f32 %v450, 1.442695
    %v464 = vpow.pop %v463
    %v465 = vmul.f32 %v451, 1.442695
    %v466 = vpow.pop %v465
    %v467 = vmul.f32 %v452, 1.442695
    %v468 = vpow.pop %v467
    %v469 = vsel %vm420, %v454, 0.0
    %470 = vadd.xlane.f32.xlu0 %v469
    %v471 = vpop.xlane.xlu0 %470
    %v472 = vsel %vm420, %v456, 0.0
    %473 = vadd.xlane.f32.xlu0 %v472
    %v474 = vpop.xlane.xlu0 %473
    %v475 = vsel %vm420, %v458, 0.0
    %476 = vadd.xlane.f32.xlu0 %v475
    %v477 = vpop.xlane.xlu0 %476
    %v478 = vsel %vm420, %v460, 0.0
    %479 = vadd.xlane.f32.xlu0 %v478
    %v480 = vpop.xlane.xlu0 %479
    %v481 = vsel %vm420, %v462, 0.0
    %482 = vadd.xlane.f32.xlu0 %v481
    %v483 = vpop.xlane.xlu0 %482
    %v484 = vsel %vm420, %v464, 0.0
    %485 = vadd.xlane.f32.xlu0 %v484
    %v486 = vpop.xlane.xlu0 %485
    %v487 = vsel %vm420, %v466, 0.0
    %488 = vadd.xlane.f32.xlu0 %v487
    %v489 = vpop.xlane.xlu0 %488
    %v490 = vsel %vm420, %v468, 0.0
    %491 = vadd.xlane.f32.xlu0 %v490
    %v492 = vpop.xlane.xlu0 %491
    %v493 = vrcp.pop %v471
    %v494 = vrcp.pop %v474
    %v495 = vrcp.pop %v477
    %v496 = vrcp.pop %v480
    %v497 = vrcp.pop %v483
    %v498 = vrcp.pop %v486
    %v499 = vrcp.pop %v489
    %v500 = vrcp.pop %v492
    %v501 = vmul.f32 %v454, %v493
    %v502 = vmul.f32 %v456, %v494
    %v503 = vmul.f32 %v458, %v495
    %v504 = vmul.f32 %v460, %v496
    %v505 = vmul.f32 %v462, %v497
    %v506 = vmul.f32 %v464, %v498
    %v507 = vmul.f32 %v466, %v499
    %v508 = vmul.f32 %v468, %v500
    %v509 = vpack.c.bf16 %v502, %v501
    %v510 = vpack.c.bf16 %v504, %v503
    %v511 = vpack.c.bf16 %v506, %v505
    %v512 = vpack.c.bf16 %v508, %v507
    %513 = vrot.lane.b32.xlu0 %v343, 64
    %v514 = vpop.permute.xlu0 %513
    %515 = vrot.lane.b32.xlu0 %v344, 64
    %v516 = vpop.permute.xlu0 %515
    %517 = vrot.lane.b32.xlu0 %v345, 64
    %v518 = vpop.permute.xlu0 %517
    %519 = vrot.lane.b32.xlu0 %v346, 64
    %v520 = vpop.permute.xlu0 %519
    %v526 = vsel %vm420, %v509, 0
    %v529 = vsel %vm420, %v510, 0
    %v532 = vsel %vm420, %v511, 0
    %v535 = vsel %vm420, %v512, 0
    %537 = vmatpush.bf16.msra.mxu0 0
    %538 = vmatpush.bf16.msra.mxu0 0
    %539 = vmatpush.bf16.msra.mxu0 0
    %540 = vmatpush.bf16.msra.mxu0 0
    %541 = vmatpush.bf16.msra.mxu0 %v520
    %542 = vmatpush.bf16.msra.mxu0 %v518
    %543 = vmatpush.bf16.msra.mxu0 %v516
    %544 = vmatpush.bf16.msra.mxu0 %v514
    %545 = vmatmul.bf16.gmra.mxu0 %v526
    %v546 = vpop.f32.mrf.mxu0
    %v547 = vadd.f32 0.0, %v546
    %v548 = vpop.f32.mrf.mxu0
    %v549 = vadd.f32 0.0, %v548
    %550 = vmatmul.bf16.gmra.mxu0 %v529
    %v551 = vpop.f32.mrf.mxu0
    %v552 = vadd.f32 0.0, %v551
    %v553 = vpop.f32.mrf.mxu0
    %v554 = vadd.f32 0.0, %v553
    %555 = vmatmul.bf16.gmra.mxu0 %v532
    %v556 = vpop.f32.mrf.mxu0
    %v557 = vadd.f32 0.0, %v556
    %v558 = vpop.f32.mrf.mxu0
    %v559 = vadd.f32 0.0, %v558
    %560 = vmatmul.bf16.gmra.mxu0 %v535
    %v561 = vpop.f32.mrf.mxu0
    %v562 = vadd.f32 0.0, %v561
    %v563 = vpop.f32.mrf.mxu0
    %v564 = vadd.f32 0.0, %v563
    %565 = vdwg.mxu0
    %v566 = vpack.c.bf16 %v549, %v547
    %v567 = vpack.c.bf16 %v554, %v552
    %v568 = vpack.c.bf16 %v559, %v557
    %v569 = vpack.c.bf16 %v564, %v562
    %v570 = vld [vmem:[#allocation3 + $0x48] sm:$0xff]
    %v571 = vld [vmem:[#allocation3 + $0x50] sm:$0xff]
    %v572 = vld [vmem:[#allocation3 + $0x58] sm:$0xff]
    %v573 = vld [vmem:[#allocation3 + $0x60] sm:$0xff]
    %v574 = vpack.c.bf16 %v571, %v570
    %v575 = vpack.c.bf16 %v573, %v572
    %v576 = vld [vmem:[#allocation3 + $0xe0] sm:$0x1]
    %v577 = vperm.slane %v576, 0
    %v579 = vsel %vm102, %v566, 0
    %v582 = vsel %vm102, %v567, 0
    %v585 = vsel %vm102, %v568, 0
    %v588 = vsel %vm102, %v569, 0
    %590 = vmatpush.bf16.msra.mxu0 0
    %591 = vmatpush.bf16.msra.mxu0 0
    %592 = vmatpush.bf16.msra.mxu0 0
    %593 = vmatpush.bf16.msra.mxu0 0
    %594 = vmatpush.bf16.msra.mxu0 0
    %595 = vmatpush.bf16.msra.mxu0 0
    %596 = vmatpush.bf16.msra.mxu0 %v575
    %597 = vmatpush.bf16.msra.mxu0 %v574
    %598 = vmatmul.bf16.gmra.mxu0 %v579
    %v599 = vpop.f32.mrf.mxu0
    %v600 = vadd.f32 %v577, %v599
    %v601 = vpop.f32.mrf.mxu0
    %v602 = vadd.f32 %v577, %v601
    %603 = vmatmul.bf16.gmra.mxu0 %v582
    %v604 = vpop.f32.mrf.mxu0
    %v605 = vadd.f32 %v577, %v604
    %v606 = vpop.f32.mrf.mxu0
    %v607 = vadd.f32 %v577, %v606
    %608 = vmatmul.bf16.gmra.mxu0 %v585
    %v609 = vpop.f32.mrf.mxu0
    %v610 = vadd.f32 %v577, %v609
    %v611 = vpop.f32.mrf.mxu0
    %v612 = vadd.f32 %v577, %v611
    %613 = vmatmul.bf16.gmra.mxu0 %v588
    %v614 = vpop.f32.mrf.mxu0
    %v615 = vadd.f32 %v577, %v614
    %v616 = vpop.f32.mrf.mxu0
    %v617 = vadd.f32 %v577, %v616
    %618 = vdwg.mxu0
    %v619 = vadd.f32 %v270, %v600
    %v620 = vadd.f32 %v271, %v602
    %v621 = vadd.f32 %v272, %v605
    %v622 = vadd.f32 %v273, %v607
    %v623 = vadd.f32 %v274, %v610
    %v624 = vadd.f32 %v275, %v612
    %v625 = vadd.f32 %v276, %v615
    %v626 = vadd.f32 %v277, %v617
    %v627 = vpack.c.bf16 %v620, %v619
    %v628 = vpack.c.bf16 %v622, %v621
    %v629 = vpack.c.bf16 %v624, %v623
    %v630 = vpack.c.bf16 %v626, %v625
    %v631 = vld [vmem:[#allocation3 + $0x68] sm:$0xff]
    %v632 = vld [vmem:[#allocation3 + $0x70] sm:$0xff]
    %v633 = vld [vmem:[#allocation3 + $0x78] sm:$0xff]
    %v634 = vld [vmem:[#allocation3 + $0x80] sm:$0xff]
    %v635 = vpack.c.bf16 %v632, %v631
    %v636 = vpack.c.bf16 %v634, %v633
    %v637 = vld [vmem:[#allocation3 + $0xe8] sm:$0x1]
    %v638 = vperm.slane %v637, 0
    %v640 = vsel %vm102, %v627, 0
    %v643 = vsel %vm102, %v628, 0
    %v646 = vsel %vm102, %v629, 0
    %v649 = vsel %vm102, %v630, 0
    %651 = vmatpush.bf16.msra.mxu0 0
    %652 = vmatpush.bf16.msra.mxu0 0
    %653 = vmatpush.bf16.msra.mxu0 0
    %654 = vmatpush.bf16.msra.mxu0 0
    %655 = vmatpush.bf16.msra.mxu0 0
    %656 = vmatpush.bf16.msra.mxu0 0
    %657 = vmatpush.bf16.msra.mxu0 %v636
    %658 = vmatpush.bf16.msra.mxu0 %v635
    %659 = vmatmul.bf16.gmra.mxu0 %v640
    %v660 = vpop.f32.mrf.mxu0
    %v661 = vadd.f32 %v638, %v660
    %v662 = vpop.f32.mrf.mxu0
    %v663 = vadd.f32 %v638, %v662
    %664 = vmatmul.bf16.gmra.mxu0 %v643
    %v665 = vpop.f32.mrf.mxu0
    %v666 = vadd.f32 %v638, %v665
    %v667 = vpop.f32.mrf.mxu0
    %v668 = vadd.f32 %v638, %v667
    %669 = vmatmul.bf16.gmra.mxu0 %v646
    %v670 = vpop.f32.mrf.mxu0
    %v671 = vadd.f32 %v638, %v670
    %v672 = vpop.f32.mrf.mxu0
    %v673 = vadd.f32 %v638, %v672
    %674 = vmatmul.bf16.gmra.mxu0 %v649
    %v675 = vpop.f32.mrf.mxu0
    %v676 = vadd.f32 %v638, %v675
    %v677 = vpop.f32.mrf.mxu0
    %v678 = vadd.f32 %v638, %v677
    %679 = vdwg.mxu0
    %v680 = vld [vmem:[#allocation3 + $0x88] sm:$0xff]
    %v681 = vld [vmem:[#allocation3 + $0x90] sm:$0xff]
    %v682 = vld [vmem:[#allocation3 + $0x98] sm:$0xff]
    %v683 = vld [vmem:[#allocation3 + $0xa0] sm:$0xff]
    %v684 = vpack.c.bf16 %v681, %v680
    %v685 = vpack.c.bf16 %v683, %v682
    %v686 = vpack.c.bf16 %v267, %v267
    %v688 = vsel %vm102, %v686, 0
    %690 = vmatpush.bf16.msra.mxu0 0
    %691 = vmatpush.bf16.msra.mxu0 0
    %692 = vmatpush.bf16.msra.mxu0 0
    %693 = vmatpush.bf16.msra.mxu0 0
    %694 = vmatpush.bf16.msra.mxu0 0
    %695 = vmatpush.bf16.msra.mxu0 0
    %696 = vmatpush.bf16.msra.mxu0 %v685
    %697 = vmatpush.bf16.msra.mxu0 %v684
    %698 = vmatmul.bf16.gmra.mxu0 %v688
    %v699 = vpop.f32.mrf.mxu0
    %v700 = vadd.f32 0.0, %v699
    %v701 = vpop.f32.mrf.mxu0
    %702 = vdwg.mxu0
    %v703 = vadd.f32 %v661, %v700
    %v704 = vtanh.pop %v703
    %v705 = vpack.c.bf16 %v704, %v704
    %v707 = vsel %vm102, %v705, 0
    %709 = vmatpush.bf16.msra.mxu0 0
    %710 = vmatpush.bf16.msra.mxu0 0
    %711 = vmatpush.bf16.msra.mxu0 0
    %712 = vmatpush.bf16.msra.mxu0 0
    %713 = vmatpush.bf16.msra.mxu0 0
    %714 = vmatpush.bf16.msra.mxu0 0
    %715 = vmatpush.bf16.msra.mxu0 %v685
    %716 = vmatpush.bf16.msra.mxu0 %v684
    %717 = vmatmul.bf16.gmra.mxu0 %v707
    %v718 = vpop.f32.mrf.mxu0
    %v719 = vadd.f32 0.0, %v718
    %v720 = vpop.f32.mrf.mxu0
    %721 = vdwg.mxu0
    %v722 = vadd.f32 %v663, %v719
    %v723 = vtanh.pop %v722
    %v724 = vpack.c.bf16 %v723, %v723
    %v726 = vsel %vm102, %v724, 0
    %728 = vmatpush.bf16.msra.mxu0 0
    %729 = vmatpush.bf16.msra.mxu0 0
    %730 = vmatpush.bf16.msra.mxu0 0
    %731 = vmatpush.bf16.msra.mxu0 0
    %732 = vmatpush.bf16.msra.mxu0 0
    %733 = vmatpush.bf16.msra.mxu0 0
    %734 = vmatpush.bf16.msra.mxu0 %v685
    %735 = vmatpush.bf16.msra.mxu0 %v684
    %736 = vmatmul.bf16.gmra.mxu0 %v726
    %v737 = vpop.f32.mrf.mxu0
    %v738 = vadd.f32 0.0, %v737
    %v739 = vpop.f32.mrf.mxu0
    %740 = vdwg.mxu0
    %v741 = vadd.f32 %v666, %v738
    %v742 = vtanh.pop %v741
    %v743 = vpack.c.bf16 %v742, %v742
    %v745 = vsel %vm102, %v743, 0
    %747 = vmatpush.bf16.msra.mxu0 0
    %748 = vmatpush.bf16.msra.mxu0 0
    %749 = vmatpush.bf16.msra.mxu0 0
    %750 = vmatpush.bf16.msra.mxu0 0
    %751 = vmatpush.bf16.msra.mxu0 0
    %752 = vmatpush.bf16.msra.mxu0 0
    %753 = vmatpush.bf16.msra.mxu0 %v685
    %754 = vmatpush.bf16.msra.mxu0 %v684
    %755 = vmatmul.bf16.gmra.mxu0 %v745
    %v756 = vpop.f32.mrf.mxu0
    %v757 = vadd.f32 0.0, %v756
    %v758 = vpop.f32.mrf.mxu0
    %759 = vdwg.mxu0
    %v760 = vadd.f32 %v668, %v757
    %v761 = vtanh.pop %v760
    %v762 = vpack.c.bf16 %v761, %v761
    %v764 = vsel %vm102, %v762, 0
    %766 = vmatpush.bf16.msra.mxu0 0
    %767 = vmatpush.bf16.msra.mxu0 0
    %768 = vmatpush.bf16.msra.mxu0 0
    %769 = vmatpush.bf16.msra.mxu0 0
    %770 = vmatpush.bf16.msra.mxu0 0
    %771 = vmatpush.bf16.msra.mxu0 0
    %772 = vmatpush.bf16.msra.mxu0 %v685
    %773 = vmatpush.bf16.msra.mxu0 %v684
    %774 = vmatmul.bf16.gmra.mxu0 %v764
    %v775 = vpop.f32.mrf.mxu0
    %v776 = vadd.f32 0.0, %v775
    %v777 = vpop.f32.mrf.mxu0
    %778 = vdwg.mxu0
    %v779 = vadd.f32 %v671, %v776
    %v780 = vtanh.pop %v779
    %v781 = vpack.c.bf16 %v780, %v780
    %v783 = vsel %vm102, %v781, 0
    %785 = vmatpush.bf16.msra.mxu0 0
    %786 = vmatpush.bf16.msra.mxu0 0
    %787 = vmatpush.bf16.msra.mxu0 0
    %788 = vmatpush.bf16.msra.mxu0 0
    %789 = vmatpush.bf16.msra.mxu0 0
    %790 = vmatpush.bf16.msra.mxu0 0
    %791 = vmatpush.bf16.msra.mxu0 %v685
    %792 = vmatpush.bf16.msra.mxu0 %v684
    %793 = vmatmul.bf16.gmra.mxu0 %v783
    %v794 = vpop.f32.mrf.mxu0
    %v795 = vadd.f32 0.0, %v794
    %v796 = vpop.f32.mrf.mxu0
    %797 = vdwg.mxu0
    %v798 = vadd.f32 %v673, %v795
    %v799 = vtanh.pop %v798
    %v800 = vpack.c.bf16 %v799, %v799
    %v802 = vsel %vm102, %v800, 0
    %804 = vmatpush.bf16.msra.mxu0 0
    %805 = vmatpush.bf16.msra.mxu0 0
    %806 = vmatpush.bf16.msra.mxu0 0
    %807 = vmatpush.bf16.msra.mxu0 0
    %808 = vmatpush.bf16.msra.mxu0 0
    %809 = vmatpush.bf16.msra.mxu0 0
    %810 = vmatpush.bf16.msra.mxu0 %v685
    %811 = vmatpush.bf16.msra.mxu0 %v684
    %812 = vmatmul.bf16.gmra.mxu0 %v802
    %v813 = vpop.f32.mrf.mxu0
    %v814 = vadd.f32 0.0, %v813
    %v815 = vpop.f32.mrf.mxu0
    %816 = vdwg.mxu0
    %v817 = vadd.f32 %v676, %v814
    %v818 = vtanh.pop %v817
    %v819 = vpack.c.bf16 %v818, %v818
    %v821 = vsel %vm102, %v819, 0
    %823 = vmatpush.bf16.msra.mxu0 0
    %824 = vmatpush.bf16.msra.mxu0 0
    %825 = vmatpush.bf16.msra.mxu0 0
    %826 = vmatpush.bf16.msra.mxu0 0
    %827 = vmatpush.bf16.msra.mxu0 0
    %828 = vmatpush.bf16.msra.mxu0 0
    %829 = vmatpush.bf16.msra.mxu0 %v685
    %830 = vmatpush.bf16.msra.mxu0 %v684
    %831 = vmatmul.bf16.gmra.mxu0 %v821
    %v832 = vpop.f32.mrf.mxu0
    %v833 = vadd.f32 0.0, %v832
    %v834 = vpop.f32.mrf.mxu0
    %835 = vdwg.mxu0
    %v836 = vadd.f32 %v678, %v833
    %v837 = vtanh.pop %v836
    %v838 = vpack.c.bf16 %v837, %v837
    %v839 = vld [vmem:[#allocation3 + $0xa8] sm:$0xff]
    %v840 = vld [vmem:[#allocation3 + $0xb0] sm:$0xff]
    %v841 = vld [vmem:[#allocation3 + $0xb8] sm:$0xff]
    %v842 = vld [vmem:[#allocation3 + $0xc0] sm:$0xff]
    %v843 = vpack.c.bf16 %v840, %v839
    %v844 = vpack.c.bf16 %v842, %v841
    %v845 = vld [vmem:[#allocation3 + $0xf0] sm:$0x1]
    %v846 = vperm.slane %v845, 0
    %v848 = vsel %vm102, %v838, 0
    %850 = vmatpush.bf16.msra.mxu0 0
    %851 = vmatpush.bf16.msra.mxu0 0
    %852 = vmatpush.bf16.msra.mxu0 0
    %853 = vmatpush.bf16.msra.mxu0 0
    %854 = vmatpush.bf16.msra.mxu0 0
    %855 = vmatpush.bf16.msra.mxu0 0
    %856 = vmatpush.bf16.msra.mxu0 %v844
    %857 = vmatpush.bf16.msra.mxu0 %v843
    %858 = vmatmul.bf16.gmra.mxu0 %v848
    %v859 = vpop.f32.mrf.mxu0
    %v860 = vadd.f32 %v846, %v859
    %v861 = vpop.f32.mrf.mxu0
    %862 = vdwg.mxu0
    %v863 = vlaneseq
    %v864 = vand.u32 %v863, 127
    %vm865 = vcmp.lt.s32.totalorder %v864, 4
    %v866 = vmul.f32 %v860, 1.442695
    %v867 = vpow.pop %v866
    %v868 = vsel %vm865, %v867, %v860
    %869 = vst [vmem:[%s3] sm:$0xff] %v868
    // Predicated region
    $region18: #{rnn_hlr_forward.1} parent=1 // pred_check
      _
    $region19: #{rnn_hlr_forward.1} parent=1 // pred_check_branch
      %871 = sbr.rel (0) target = $region21
    $region20: #{rnn_hlr_forward.1} parent=1 // pred_region
      _
    $region21: #{rnn_hlr_forward.1} parent=1 // pred_fallthru
      _
    // Predicated region
    $region22: #{rnn_hlr_forward.1} parent=1 // pred_check
      _
    $region23: #{rnn_hlr_forward.1} parent=1 // pred_check_branch
      %873 = sbr.rel (0) target = $region25
    $region24: #{rnn_hlr_forward.1} parent=1 // pred_region
      _
    $region25: #{rnn_hlr_forward.1} parent=1 // pred_fallthru
      _
    %874 = vsyncpa [#allocation4], 1

</llo_original>
